<compile_context>
chip_gen: v5e
topology: v5e:2x2
jax: 0.10.0
libtpu: 0.0.40
codegen_flags: <defaults>
</compile_context>

<pallas_src>
import math

import jax
import jax.numpy as jnp
from jax.experimental import pallas as pl
from jax.experimental.pallas import tpu as pltpu


def _cast_copy_kernel(x_ref, o_ref):
    # Identity with cast to float32 (matches cast_inputs=torch.float32).
    o_ref[...] = x_ref[...].astype(o_ref.dtype)


def _round_up(n, m):
    return ((n + m - 1) // m) * m


def raw_audio_forward(x, *, lanes=1024, max_block_rows=512):
    """Pallas implementation of RawAudio.forward.

    Args:
      x: raw waveform of any shape / real dtype (typically [batch, time]).
    Returns:
      Array of the same shape, cast to float32, values unchanged.
    """
    orig_shape = x.shape
    total = math.prod(orig_shape)

    # Lane-dense slab: flatten and view as (rows, lanes) with lanes a large
    # multiple of 128 and rows a multiple of 8 (full sublane utilisation),
    # independent of the (possibly tiny) batch dimension.
    n_rows = _round_up(pl.cdiv(total, lanes), 8)
    padded_total = n_rows * lanes

    flat = x.reshape((total,))
    if padded_total != total:
        flat = jnp.pad(flat, (0, padded_total - total))
    slab = flat.reshape((n_rows, lanes))

    # Block: up to (512, 1024). n_rows is a multiple of 8, so block_rows is
    # too. Pallas handles a ragged trailing block via the pl.cdiv grid.
    block_rows = min(max_block_rows, n_rows)
    grid = (pl.cdiv(n_rows, block_rows),)

    out = pl.pallas_call(
        _cast_copy_kernel,
        out_shape=jax.ShapeDtypeStruct((n_rows, lanes), jnp.float32),
        grid_spec=pltpu.PrefetchScalarGridSpec(
            num_scalar_prefetch=0,
            grid=grid,
            in_specs=[pl.BlockSpec((block_rows, lanes), lambda r: (r, 0))],
            out_specs=pl.BlockSpec((block_rows, lanes), lambda r: (r, 0)),
        ),
        compiler_params=pltpu.CompilerParams(
            dimension_semantics=("parallel",),
            vmem_limit_bytes=32 * 1024 * 1024,
        ),
    )(slab)

    out_flat = out.reshape((padded_total,))
    if padded_total != total:
        out_flat = out_flat[:total]
    return out_flat.reshape(orig_shape)


if __name__ == "__main__":
    # RawAudio has no parameters (empty __init__), so nothing to initialize.
    key = jax.random.PRNGKey(0)

    # Case 1: nicely sized input (bf16 so the f32 cast is exercised).
    batch, time = 2, 1024
    x = jax.random.normal(key, (batch, time), dtype=jnp.bfloat16)
    y = jax.block_until_ready(raw_audio_forward(x))
    ref = x.astype(jnp.float32)
    assert y.shape == ref.shape
    assert y.dtype == jnp.float32
    assert bool(jnp.all(y == ref))

    # Case 2: arbitrary (non-tile-aligned) audio length — exercises pad/trim.
    x2 = jax.random.normal(jax.random.PRNGKey(1), (3, 777), dtype=jnp.bfloat16)
    y2 = jax.block_until_ready(raw_audio_forward(x2))
    ref2 = x2.astype(jnp.float32)
    assert y2.shape == ref2.shape
    assert y2.dtype == jnp.float32
    assert bool(jnp.all(y2 == ref2))

    # Case 3: already-float32 input — still an exact identity.
    x3 = jax.random.normal(jax.random.PRNGKey(2), (2, 4096), dtype=jnp.float32)
    y3 = jax.block_until_ready(raw_audio_forward(x3))
    assert y3.shape == x3.shape
    assert y3.dtype == jnp.float32
    assert bool(jnp.all(y3 == x3))

    print("KERNEL_OK")
</pallas_src>

<mosaic_0001>
module attributes {stable_mosaic.version = 11 : i64} {
  func.func @_cast_copy_kernel(%arg0: i32, %arg1: memref<8x1024xbf16, #tpu.memory_space<vmem>>, %arg2: memref<8x1024xf32, #tpu.memory_space<vmem>>) attributes {dimension_semantics = [#tpu.dimension_semantics<parallel>], iteration_bounds = array<i64: 1>, scalar_prefetch = 0 : i64, scratch_operands = 0 : i64, tpu.core_type = #tpu.core_type<tc>, window_params = [{transform_indices = @transform_0, window_bounds = array<i64: 8, 1024>}, {transform_indices = @transform_1, window_bounds = array<i64: 8, 1024>}]} {
    %c0 = arith.constant 0 : index
    %c0_0 = arith.constant 0 : index
    %0 = vector.load %arg1[%c0, %c0_0] : memref<8x1024xbf16, #tpu.memory_space<vmem>>, vector<8x1024xbf16>
    %1 = arith.extf %0 : vector<8x1024xbf16> to vector<8x1024xf32>
    %c0_1 = arith.constant 0 : index
    %c0_2 = arith.constant 0 : index
    %2 = vector.load %arg2[%c0_1, %c0_2] : memref<8x1024xf32, #tpu.memory_space<vmem>>, vector<8x1024xf32>
    tpu.vector_store %arg2[%c0_1, %c0_2], %1 {strides = array<i32>} : memref<8x1024xf32, #tpu.memory_space<vmem>>, vector<8x1024xf32>,
    return
  }
  func.func @transform_0(%arg0: i32) -> (i32, i32) {
    %c0_i32 = arith.constant 0 : i32
    %c0_i32_0 = arith.constant 0 : i32
    return %arg0, %c0_i32 : i32, i32
  }
  func.func @transform_1(%arg0: i32) -> (i32, i32) {
    %c0_i32 = arith.constant 0 : i32
    %c0_i32_0 = arith.constant 0 : i32
    return %arg0, %c0_i32 : i32, i32
  }
}

</mosaic_0001>

<llo_original>
// kernel: tpu_custom_call.1
$region0: #{tpu_custom_call.1}
  #allocation0 [shape = 'u32[]', space=smem, size = 0x4, offset = 0x4, fixed_abs, tag = 'smem constant byte address 0x4 - core index']
  #allocation1 [shape = 'u32[72,128]{1,0:T(1,128)}', space=vmem, size = 0x9000, scoped, tag = 'internal scratch']
  %s0 = inlined_call_operand.hbm [shape: bf16[8,1024], index: 0, kind: input, shape index: {}]
  %s1 = inlined_call_operand.hbm [shape: f32[8,1024], index: 1, kind: output, shape index: {}]
  %s2 = sld [smem:[#allocation0]]
  $region18: #{tpu_custom_call.1} parent=0
    _
  %s4 = ssub.s32 1, %s2
  %s5 = scalar_select 0, %s4, %s2
  $region1: #{tpu_custom_call.1} parent=0
    #allocation2 [shape = 'u8[16384]{0}', space=vmem, size = 0x4000, scoped, tag = 'input window, operand 0, single buffered']
    #allocation3 [shape = 's32[1]{0}', space=sflag, size = 0x4, scoped, tag = 'scoped memory for tpu_custom_call.1']
    #allocation4 [shape = 's32[1]{0}', space=sflag, size = 0x4, scoped, tag = 'scoped memory for tpu_custom_call.1']
    #allocation5 [shape = 'u8[32768]{0}', space=vmem, size = 0x8000, scoped, tag = 'output window, operand 0, single buffered']
    %6 = vsyncpa [#allocation3], 0
    %7 = vsyncpa [#allocation4], 0
    // Predicated region
    $region2: #{tpu_custom_call.1} parent=1 // pred_check
      _
    $region3: #{tpu_custom_call.1} parent=1 // pred_check_branch
      %9 = sbr.rel (0) target = $region5
    $region4: #{tpu_custom_call.1} parent=1 // pred_region
      %11 = vsyncadd [#allocation3], 0
      %s13 = sshll.u32 %s0, 4
      %s14 = int_to_ptr.hbm [resolvable:$true] %s13
      %s15 = sshll.u32 [#allocation2], 4
      %s16 = int_to_ptr.vmem [resolvable:$true] %s15
      %18 = dma.hbm_to_vmem [thread:$0]  %s14, 512, %s16, [#allocation3]
    $region5: #{tpu_custom_call.1} parent=1 // pred_fallthru
      _
    // Predicated region
    $region6: #{tpu_custom_call.1} parent=1 // pred_check
      _
    $region7: #{tpu_custom_call.1} parent=1 // pred_check_branch
      %20 = sbr.rel (0) target = $region9
    $region8: #{tpu_custom_call.1} parent=1 // pred_region
      %22 = dma.done [#allocation3], 512
    $region9: #{tpu_custom_call.1} parent=1 // pred_fallthru
      _
    %v23 = vld [vmem:[#allocation2] sm:$0xff]
    %v24 = vld [vmem:[#allocation2 + $0x8] sm:$0xff]
    %v25 = vld [vmem:[#allocation2 + $0x10] sm:$0xff]
    %v26 = vld [vmem:[#allocation2 + $0x18] sm:$0xff]
    %v27 = vunpack.c.l.bf16 %v23
    %v28 = vunpack.c.h.bf16 %v23
    %v29 = vunpack.c.l.bf16 %v24
    %v30 = vunpack.c.h.bf16 %v24
    %v31 = vunpack.c.l.bf16 %v25
    %v32 = vunpack.c.h.bf16 %v25
    %v33 = vunpack.c.l.bf16 %v26
    %v34 = vunpack.c.h.bf16 %v26
    %35 = vst [vmem:[#allocation5] sm:$0xff] %v27
    %36 = vst [vmem:[#allocation5 + $0x8] sm:$0xff] %v28
    %37 = vst [vmem:[#allocation5 + $0x10] sm:$0xff] %v29
    %38 = vst [vmem:[#allocation5 + $0x18] sm:$0xff] %v30
    %39 = vst [vmem:[#allocation5 + $0x20] sm:$0xff] %v31
    %40 = vst [vmem:[#allocation5 + $0x28] sm:$0xff] %v32
    %41 = vst [vmem:[#allocation5 + $0x30] sm:$0xff] %v33
    %42 = vst [vmem:[#allocation5 + $0x38] sm:$0xff] %v34
    // Predicated region
    $region10: #{tpu_custom_call.1} parent=1 // pred_check
      _
    $region11: #{tpu_custom_call.1} parent=1 // pred_check_branch
      %44 = sbr.rel (0) target = $region13
    $region12: #{tpu_custom_call.1} parent=1 // pred_region
      %46 = vsyncadd [#allocation4], 0
      %s48 = sshll.u32 [#allocation5], 4
      %s49 = int_to_ptr.vmem [resolvable:$true] %s48
      %s50 = sshll.u32 %s1, 4
      %s51 = int_to_ptr.hbm [resolvable:$true] %s50
      %53 = dma.vmem_to_hbm [thread:$0]  %s49, 1024, %s51, [#allocation4]
    $region13: #{tpu_custom_call.1} parent=1 // pred_fallthru
      _
    // Predicated region
    $region14: #{tpu_custom_call.1} parent=1 // pred_check
      _
    $region15: #{tpu_custom_call.1} parent=1 // pred_check_branch
      %55 = sbr.rel (0) target = $region17
    $region16: #{tpu_custom_call.1} parent=1 // pred_region
      %57 = dma.done [#allocation4], 1024
    $region17: #{tpu_custom_call.1} parent=1 // pred_fallthru
      _
    %58 = vsyncpa [#allocation3], 1
    %59 = vsyncpa [#allocation4], 1

</llo_original>
